<compile_context>
chip_gen: v5e
topology: v5e:2x2
jax: 0.10.0
libtpu: 0.0.40
codegen_flags: <defaults>
</compile_context>

<pallas_src>
import jax
import jax.numpy as jnp
from jax.experimental import pallas as pl
from jax.experimental.pallas import tpu as pltpu


# ---------------------------------------------------------------------------
# Kernel
# ---------------------------------------------------------------------------
def _make_hln_kernel(has_scale):
    """Build the fused kernel; `has_scale` selects the attention-scaled variant."""

    def kernel(x_ref, w1_ref, b1_ref, w2t_ref, b2_ref, gamma_ref, beta_ref, *rest):
        if has_scale:
            scale_ref, o_ref = rest
        else:
            (o_ref,) = rest

        x = x_ref[...].astype(jnp.float32)                        # [T, D]
        inv_d = 1.0 / x.shape[-1]

        # --- epsilon controller MLP ---
        # First Linear in bf16 on the MXU with f32 accumulation.  Numerically
        # free: the MLP output only perturbs the added epsilon (1e-6 scale).
        h = jnp.dot(x.astype(jnp.bfloat16), w1_ref[...],
                    preferred_element_type=jnp.float32) + b1_ref[...]
        # tanh GELU routes to the otherwise-idle EUP slot.
        h = jax.nn.gelu(h, approximate=True)
        # Second Linear (H -> 1) as VPU multiply + lane reduction (w2 transposed).
        e = jnp.sum(h * w2t_ref[...], axis=-1, keepdims=True) + b2_ref[0, 0]
        eps_adj = jax.nn.sigmoid(e)                               # [T, 1]
        if has_scale:
            eps_adj = eps_adj * (1.0 + scale_ref[...])

        # --- layer norm with adaptive epsilon (f32, single pass over x) ---
        s1 = jnp.sum(x, axis=-1, keepdims=True)
        s2 = jnp.sum(x * x, axis=-1, keepdims=True)
        mean = s1 * inv_d
        var = jnp.maximum(s2 * inv_d - mean * mean, 0.0)          # unbiased=False
        adaptive_eps = 1e-6 * (1.0 + eps_adj)
        inv_std = jax.lax.rsqrt(var + adaptive_eps)
        y = (x - mean) * inv_std * gamma_ref[...] + beta_ref[...]
        o_ref[...] = y.astype(o_ref.dtype)

    return kernel


# ---------------------------------------------------------------------------
# Tile / VMEM budgeting
# ---------------------------------------------------------------------------
def _round_up(n, m):
    return -(-n // m) * m


def _vmem_capacity_bytes():
    try:
        return int(pltpu.get_tpu_info().vmem_capacity_bytes)
    except Exception:
        return 128 * 1024 * 1024


def _invariant_bytes(D, H):
    """Grid-invariant operands, assuming default double buffering (2 copies)."""
    lane = lambda n: _round_up(n, 128)
    sub = lambda n: _round_up(n, 8)
    b = 0
    b += 2 * sub(D) * lane(H) * 2            # w1 (bf16)
    b += 2 * sub(1) * lane(H) * 4 * 2        # b1 + w2^T (f32)
    b += 2 * sub(1) * lane(D) * 4 * 2        # gamma + beta (f32)
    return b


def _per_row_bytes(D, H):
    """Bytes of VMEM per row of the tile: pipelined buffers + kernel temporaries."""
    lane = lambda n: _round_up(n, 128)
    Dl, Hl = lane(D), lane(max(1, H))
    b = 0
    b += 2 * Dl * 4          # x input tile, double-buffered
    b += 2 * Dl * 4          # output tile, double-buffered
    b += 2 * lane(1) * 4     # scale tile, double-buffered (worst case)
    b += Dl * 4              # f32 working slab of x
    b += Dl * 2              # bf16 cast of x fed to the MXU
    b += Hl * 4              # MLP hidden h
    b += Dl * 4              # result slab before writeback
    return b


def _choose_tile_and_vmem(rows, D):
    H = max(1, D // 4)
    cap = _vmem_capacity_bytes()
    # Never request all of physical VMEM: leave compiler scratch / semaphore /
    # spill headroom (~102 MiB on 128 MiB parts, ~51 MiB on 64 MiB v7x).
    budget = int(cap * 0.8)
    inv = _invariant_bytes(D, H)
    per_row = _per_row_bytes(D, H)
    rows8 = max(8, _round_up(rows, 8))

    avail = budget - inv - (4 << 20)          # fixed slack
    tile = 1024
    while tile > 128 and tile * per_row > avail:
        tile //= 2
    # TODO(synk): for very large D (D*H*2 approaching the VMEM budget, D >~ 8-10K
    # on v7x) K-tile the controller matmul over w1 chunks instead of keeping all
    # of w1 resident; as written the tile floor is 128 and huge D may not fit.

    # Keep ~3 grid steps for pipeline overlap when there is enough work, but
    # never trade tile size below 256 rows for it (kernel is HBM-bound).
    while tile > 256 and pl.cdiv(rows8, tile) < 3:
        tile //= 2
    tile = max(8, min(tile, rows8))

    # v7x-class parts (2 TensorCores): prefer an even step count on the
    # 'parallel' axis so both cores get equal work.  Perf-only heuristic.
    if cap <= 64 * 1024 * 1024:
        steps = pl.cdiv(rows8, tile)
        if steps > 1 and steps % 2 == 1:
            tile = max(8, _round_up(pl.cdiv(rows8, steps + 1), 8))

    est = inv + tile * per_row + (8 << 20)
    vmem_limit = int(max(32 << 20, min(budget, est)))
    return tile, vmem_limit


# ---------------------------------------------------------------------------
# Wrapper
# ---------------------------------------------------------------------------
def hierarchical_layer_norm(x, params, attention_weights=None):
    """x: [B, S, D] float32.  attention_weights: optional [B, S, num_splats]."""
    B, S, D = x.shape
    H = max(1, D // 4)
    rows = B * S
    x2 = x.reshape(rows, D)

    has_scale = attention_weights is not None
    if has_scale:
        # glue: attention magnitude / global max (tiny global reduction)
        attn_mag = attention_weights.reshape(rows, -1).sum(axis=-1, keepdims=True)
        scale = (attn_mag / (attn_mag.max() + 1e-8)).astype(jnp.float32)

    tile, vmem_limit = _choose_tile_and_vmem(rows, D)
    grid = (pl.cdiv(rows, tile),)        # partial trailing block masked by Pallas

    w1 = params["w1"].astype(jnp.bfloat16)                    # [D, H] bf16
    b1 = params["b1"].reshape(1, H).astype(jnp.float32)       # [1, H]
    w2t = params["w2"].reshape(1, H).astype(jnp.float32)      # [1, H] (transposed)
    b2 = params["b2"].reshape(1, 1).astype(jnp.float32)       # [1, 1] -> SMEM
    gamma = params["gamma"].reshape(1, D).astype(jnp.float32)
    beta = params["beta"].reshape(1, D).astype(jnp.float32)

    in_specs = [
        pl.BlockSpec((tile, D), lambda i: (i, 0)),                  # x rows
        pl.BlockSpec((D, H), lambda i: (0, 0)),                     # w1 (grid-invariant)
        pl.BlockSpec((1, H), lambda i: (0, 0)),                     # b1
        pl.BlockSpec((1, H), lambda i: (0, 0)),                     # w2^T
        pl.BlockSpec(memory_space=pltpu.MemorySpace.SMEM),          # b2 scalar
        pl.BlockSpec((1, D), lambda i: (0, 0)),                     # gamma
        pl.BlockSpec((1, D), lambda i: (0, 0)),                     # beta
    ]
    args = [x2, w1, b1, w2t, b2, gamma, beta]
    if has_scale:
        in_specs.append(pl.BlockSpec((tile, 1), lambda i: (i, 0)))  # scale
        args.append(scale)

    out = pl.pallas_call(
        _make_hln_kernel(has_scale),
        out_shape=jax.ShapeDtypeStruct((rows, D), x.dtype),
        grid_spec=pltpu.PrefetchScalarGridSpec(
            num_scalar_prefetch=0,
            grid=grid,
            in_specs=in_specs,
            out_specs=pl.BlockSpec((tile, D), lambda i: (i, 0)),
        ),
        compiler_params=pltpu.CompilerParams(
            dimension_semantics=("parallel",),
            vmem_limit_bytes=vmem_limit,
        ),
    )(*args)

    return out.reshape(B, S, D)


# ---------------------------------------------------------------------------
# Plain-JAX reference (mirrors the PyTorch adaptive-epsilon path, erf GELU)
# ---------------------------------------------------------------------------
def _reference(x, params, attention_weights=None):
    h = jnp.einsum("bsd,dh->bsh", x, params["w1"]) + params["b1"]
    h = jax.nn.gelu(h, approximate=False)
    e = jnp.einsum("bsh,ho->bso", h, params["w2"]) + params["b2"]
    eps_adj = jax.nn.sigmoid(e)                              # [B,S,1]
    if attention_weights is not None:
        mag = attention_weights.sum(-1, keepdims=True)
        eps_adj = eps_adj * (1.0 + mag / (mag.max() + 1e-8))
    mean = x.mean(-1, keepdims=True)
    var = jnp.mean((x - mean) ** 2, axis=-1, keepdims=True)
    adaptive_eps = 1e-6 * (1.0 + eps_adj)
    xn = (x - mean) / jnp.sqrt(var + adaptive_eps)
    return xn * params["gamma"] + params["beta"]


def make_params(model_dim, key):
    H = model_dim // 4
    k1, k2, k3, k4 = jax.random.split(key, 4)
    bound1 = 1.0 / jnp.sqrt(model_dim)
    bound2 = 1.0 / jnp.sqrt(H)
    return {
        # epsilon_controller: Linear(D, D//4) -> GELU -> Linear(D//4, 1) -> Sigmoid
        "w1": jax.random.uniform(k1, (model_dim, H), jnp.float32, -bound1, bound1),
        "b1": jax.random.uniform(k2, (H,), jnp.float32, -bound1, bound1),
        "w2": jax.random.uniform(k3, (H, 1), jnp.float32, -bound2, bound2),
        "b2": jax.random.uniform(k4, (1,), jnp.float32, -bound2, bound2),
        # base_norm (nn.LayerNorm default init)
        "gamma": jnp.ones((model_dim,), jnp.float32),
        "beta": jnp.zeros((model_dim,), jnp.float32),
    }
    # TODO(synk): the splat-grouped path (dict of dynamic, ragged token-index
    # lists) and the unused norm_selector head are not expressible as a static
    # Pallas kernel; only the default adaptive-epsilon forward is implemented.


if __name__ == "__main__":
    key = jax.random.PRNGKey(0)
    kx, ka, kp = jax.random.split(key, 3)

    B, S, D, NUM_SPLATS = 2, 8, 32, 20
    x = jax.random.normal(kx, (B, S, D), jnp.float32)
    attn = jax.nn.softmax(jax.random.normal(ka, (B, S, NUM_SPLATS), jnp.float32), axis=-1)
    params = make_params(D, kp)

    # attention-scaled path
    y = jax.block_until_ready(hierarchical_layer_norm(x, params, attention_weights=attn))
    y_ref = _reference(x, params, attention_weights=attn)
    assert y.shape == (B, S, D)
    assert jnp.allclose(y, y_ref, atol=1e-4, rtol=1e-4), "mismatch vs reference (attn)"

    # no-attention path (specialized kernel variant, no scale operand)
    y2 = jax.block_until_ready(hierarchical_layer_norm(x, params))
    assert jnp.allclose(y2, _reference(x, params), atol=1e-4, rtol=1e-4), "mismatch (no attn)"

    # non-multiple-of-8 row count exercises the masked partial trailing block
    x_odd = jax.random.normal(kx, (3, 7, D), jnp.float32)   # 21 rows
    y3 = jax.block_until_ready(hierarchical_layer_norm(x_odd, params))
    assert jnp.allclose(y3, _reference(x_odd, params), atol=1e-4, rtol=1e-4), "mismatch (ragged rows)"

    print("KERNEL_OK")
</pallas_src>

<mosaic_0001>
module attributes {stable_mosaic.version = 11 : i64} {
  func.func @kernel(%arg0: i32, %arg1: memref<16x32xf32, #tpu.memory_space<vmem>>, %arg2: memref<32x8xbf16, #tpu.memory_space<vmem>>, %arg3: memref<1x8xf32, #tpu.memory_space<vmem>>, %arg4: memref<1x8xf32, #tpu.memory_space<vmem>>, %arg5: memref<1x1xf32, #tpu.memory_space<smem>>, %arg6: memref<1x32xf32, #tpu.memory_space<vmem>>, %arg7: memref<1x32xf32, #tpu.memory_space<vmem>>, %arg8: memref<16x1xf32, #tpu.memory_space<vmem>>, %arg9: memref<16x32xf32, #tpu.memory_space<vmem>>) attributes {dimension_semantics = [#tpu.dimension_semantics<parallel>], iteration_bounds = array<i64: 1>, scalar_prefetch = 0 : i64, scratch_operands = 0 : i64, tpu.core_type = #tpu.core_type<tc>, window_params = [{transform_indices = @transform_0, window_bounds = array<i64: 16, 32>}, {pipeline_mode = #tpu.pipeline_mode<synchronous>, transform_indices = @transform_1, window_bounds = array<i64: 32, 8>}, {pipeline_mode = #tpu.pipeline_mode<synchronous>, transform_indices = @transform_2, window_bounds = array<i64: 1, 8>}, {pipeline_mode = #tpu.pipeline_mode<synchronous>, transform_indices = @transform_3, window_bounds = array<i64: 1, 8>}, {transform_indices = @transform_4, window_bounds = array<i64: 1, 1>}, {pipeline_mode = #tpu.pipeline_mode<synchronous>, transform_indices = @transform_5, window_bounds = array<i64: 1, 32>}, {pipeline_mode = #tpu.pipeline_mode<synchronous>, transform_indices = @transform_6, window_bounds = array<i64: 1, 32>}, {transform_indices = @transform_7, window_bounds = array<i64: 16, 1>}, {transform_indices = @transform_8, window_bounds = array<i64: 16, 32>}]} {
    %c0 = arith.constant 0 : index
    %c0_0 = arith.constant 0 : index
    %0 = vector.load %arg1[%c0, %c0_0] : memref<16x32xf32, #tpu.memory_space<vmem>>, vector<16x32xf32>
    %1 = arith.truncf %0 : vector<16x32xf32> to vector<16x32xbf16>
    %c0_1 = arith.constant 0 : index
    %c0_2 = arith.constant 0 : index
    %2 = vector.load %arg2[%c0_1, %c0_2] : memref<32x8xbf16, #tpu.memory_space<vmem>>, vector<32x8xbf16>
    %cst = arith.constant dense<0.000000e+00> : vector<16x8xf32>
    %3 = tpu.matmul %1, %2, %cst {dimension_numbers = #tpu.dot_dimension_numbers<[1], [0], [0], [1], [0, 0, 1, 1], [], []>} : vector<16x32xbf16>, vector<32x8xbf16>, vector<16x8xf32> -> vector<16x8xf32>
    %c0_3 = arith.constant 0 : index
    %c0_4 = arith.constant 0 : index
    %4 = vector.load %arg3[%c0_3, %c0_4] : memref<1x8xf32, #tpu.memory_space<vmem>>, vector<1x8xf32>
    %5 = vector.broadcast %4 : vector<1x8xf32> to vector<16x8xf32>
    %6 = arith.addf %3, %5 : vector<16x8xf32>
    %7 = arith.mulf %6, %6 : vector<16x8xf32>
    %8 = arith.mulf %6, %7 : vector<16x8xf32>
    %cst_5 = arith.constant 4.471500e-02 : f32
    %9 = vector.broadcast %cst_5 : f32 to vector<16x8xf32>
    %10 = arith.mulf %9, %8 : vector<16x8xf32>
    %11 = arith.addf %6, %10 : vector<16x8xf32>
    %cst_6 = arith.constant 0.797884583 : f32
    %12 = vector.broadcast %cst_6 : f32 to vector<16x8xf32>
    %13 = arith.mulf %12, %11 : vector<16x8xf32>
    %14 = math.tanh %13 : vector<16x8xf32>
    %cst_7 = arith.constant 1.000000e+00 : f32
    %15 = vector.broadcast %cst_7 : f32 to vector<16x8xf32>
    %16 = arith.addf %15, %14 : vector<16x8xf32>
    %cst_8 = arith.constant 5.000000e-01 : f32
    %17 = vector.broadcast %cst_8 : f32 to vector<16x8xf32>
    %18 = arith.mulf %17, %16 : vector<16x8xf32>
    %19 = arith.mulf %6, %18 : vector<16x8xf32>
    %c0_9 = arith.constant 0 : index
    %c0_10 = arith.constant 0 : index
    %20 = vector.load %arg4[%c0_9, %c0_10] : memref<1x8xf32, #tpu.memory_space<vmem>>, vector<1x8xf32>
    %21 = vector.broadcast %20 : vector<1x8xf32> to vector<16x8xf32>
    %22 = arith.mulf %19, %21 : vector<16x8xf32>
    %cst_11 = arith.constant dense<0.000000e+00> : vector<16xf32>
    %23 = vector.multi_reduction <add>, %22, %cst_11 [1] : vector<16x8xf32> to vector<16xf32>
    %24 = vector.shape_cast %23 : vector<16xf32> to vector<16x1xf32>
    %c0_12 = arith.constant 0 : index
    %c0_13 = arith.constant 0 : index
    %25 = memref.load %arg5[%c0_12, %c0_13] : memref<1x1xf32, #tpu.memory_space<smem>>
    %26 = vector.broadcast %25 : f32 to vector<16x1xf32>
    %27 = arith.addf %24, %26 : vector<16x1xf32>
    %28 = arith.negf %27 : vector<16x1xf32>
    %29 = math.exp %28 : vector<16x1xf32>
    %cst_14 = arith.constant 1.000000e+00 : f32
    %30 = vector.broadcast %cst_14 : f32 to vector<16x1xf32>
    %31 = arith.addf %30, %29 : vector<16x1xf32>
    %32 = arith.divf %30, %31 : vector<16x1xf32>
    %c0_15 = arith.constant 0 : index
    %c0_16 = arith.constant 0 : index
    %33 = vector.load %arg8[%c0_15, %c0_16] : memref<16x1xf32, #tpu.memory_space<vmem>>, vector<16x1xf32>
    %cst_17 = arith.constant 1.000000e+00 : f32
    %34 = vector.broadcast %cst_17 : f32 to vector<16x1xf32>
    %35 = arith.addf %34, %33 : vector<16x1xf32>
    %36 = arith.mulf %32, %35 : vector<16x1xf32>
    %cst_18 = arith.constant dense<0.000000e+00> : vector<16xf32>
    %37 = vector.multi_reduction <add>, %0, %cst_18 [1] : vector<16x32xf32> to vector<16xf32>
    %38 = vector.shape_cast %37 : vector<16xf32> to vector<16x1xf32>
    %39 = arith.mulf %0, %0 : vector<16x32xf32>
    %cst_19 = arith.constant dense<0.000000e+00> : vector<16xf32>
    %40 = vector.multi_reduction <add>, %39, %cst_19 [1] : vector<16x32xf32> to vector<16xf32>
    %41 = vector.shape_cast %40 : vector<16xf32> to vector<16x1xf32>
    %cst_20 = arith.constant 3.125000e-02 : f32
    %42 = vector.broadcast %cst_20 : f32 to vector<16x1xf32>
    %43 = arith.mulf %38, %42 : vector<16x1xf32>
    %cst_21 = arith.constant 3.125000e-02 : f32
    %44 = vector.broadcast %cst_21 : f32 to vector<16x1xf32>
    %45 = arith.mulf %41, %44 : vector<16x1xf32>
    %46 = arith.mulf %43, %43 : vector<16x1xf32>
    %47 = arith.subf %45, %46 : vector<16x1xf32>
    %cst_22 = arith.constant 0.000000e+00 : f32
    %48 = vector.broadcast %cst_22 : f32 to vector<16x1xf32>
    %49 = arith.maximumf %47, %48 : vector<16x1xf32>
    %cst_23 = arith.constant 1.000000e+00 : f32
    %50 = vector.broadcast %cst_23 : f32 to vector<16x1xf32>
    %51 = arith.addf %50, %36 : vector<16x1xf32>
    %cst_24 = arith.constant 9.99999997E-7 : f32
    %52 = vector.broadcast %cst_24 : f32 to vector<16x1xf32>
    %53 = arith.mulf %52, %51 : vector<16x1xf32>
    %54 = arith.addf %49, %53 : vector<16x1xf32>
    %55 = math.rsqrt %54 : vector<16x1xf32>
    %56 = vector.broadcast %43 : vector<16x1xf32> to vector<16x32xf32>
    %57 = arith.subf %0, %56 : vector<16x32xf32>
    %58 = vector.broadcast %55 : vector<16x1xf32> to vector<16x32xf32>
    %59 = arith.mulf %57, %58 : vector<16x32xf32>
    %c0_25 = arith.constant 0 : index
    %c0_26 = arith.constant 0 : index
    %60 = vector.load %arg6[%c0_25, %c0_26] : memref<1x32xf32, #tpu.memory_space<vmem>>, vector<1x32xf32>
    %61 = vector.broadcast %60 : vector<1x32xf32> to vector<16x32xf32>
    %62 = arith.mulf %59, %61 : vector<16x32xf32>
    %c0_27 = arith.constant 0 : index
    %c0_28 = arith.constant 0 : index
    %63 = vector.load %arg7[%c0_27, %c0_28] : memref<1x32xf32, #tpu.memory_space<vmem>>, vector<1x32xf32>
    %64 = vector.broadcast %63 : vector<1x32xf32> to vector<16x32xf32>
    %65 = arith.addf %62, %64 : vector<16x32xf32>
    %c0_29 = arith.constant 0 : index
    %c0_30 = arith.constant 0 : index
    %66 = vector.load %arg9[%c0_29, %c0_30] : memref<16x32xf32, #tpu.memory_space<vmem>>, vector<16x32xf32>
    tpu.vector_store %arg9[%c0_29, %c0_30], %65 {strides = array<i32>} : memref<16x32xf32, #tpu.memory_space<vmem>>, vector<16x32xf32>,
    return
  }
  func.func @transform_0(%arg0: i32) -> (i32, i32) {
    %c0_i32 = arith.constant 0 : i32
    %c0_i32_0 = arith.constant 0 : i32
    return %arg0, %c0_i32 : i32, i32
  }
  func.func @transform_1(%arg0: i32) -> (i32, i32) {
    %c0_i32 = arith.constant 0 : i32
    %c0_i32_0 = arith.constant 0 : i32
    %c0_i32_1 = arith.constant 0 : i32
    return %c0_i32, %c0_i32_0 : i32, i32
  }
  func.func @transform_2(%arg0: i32) -> (i32, i32) {
    %c0_i32 = arith.constant 0 : i32
    %c0_i32_0 = arith.constant 0 : i32
    %c0_i32_1 = arith.constant 0 : i32
    return %c0_i32, %c0_i32_0 : i32, i32
  }
  func.func @transform_3(%arg0: i32) -> (i32, i32) {
    %c0_i32 = arith.constant 0 : i32
    %c0_i32_0 = arith.constant 0 : i32
    %c0_i32_1 = arith.constant 0 : i32
    return %c0_i32, %c0_i32_0 : i32, i32
  }
  func.func @transform_4(%arg0: i32) -> (i32, i32) {
    %c0_i32 = arith.constant 0 : i32
    %c0_i32_0 = arith.constant 0 : i32
    %c0_i32_1 = arith.constant 0 : i32
    return %c0_i32, %c0_i32_0 : i32, i32
  }
  func.func @transform_5(%arg0: i32) -> (i32, i32) {
    %c0_i32 = arith.constant 0 : i32
    %c0_i32_0 = arith.constant 0 : i32
    %c0_i32_1 = arith.constant 0 : i32
    return %c0_i32, %c0_i32_0 : i32, i32
  }
  func.func @transform_6(%arg0: i32) -> (i32, i32) {
    %c0_i32 = arith.constant 0 : i32
    %c0_i32_0 = arith.constant 0 : i32
    %c0_i32_1 = arith.constant 0 : i32
    return %c0_i32, %c0_i32_0 : i32, i32
  }
  func.func @transform_7(%arg0: i32) -> (i32, i32) {
    %c0_i32 = arith.constant 0 : i32
    %c0_i32_0 = arith.constant 0 : i32
    return %arg0, %c0_i32 : i32, i32
  }
  func.func @transform_8(%arg0: i32) -> (i32, i32) {
    %c0_i32 = arith.constant 0 : i32
    %c0_i32_0 = arith.constant 0 : i32
    return %arg0, %c0_i32 : i32, i32
  }
}

</mosaic_0001>

<llo_original>
// kernel: tpu_custom_call.1
$region0: #{tpu_custom_call.1}
  #allocation0 [shape = 'u32[]', space=smem, size = 0x4, offset = 0x4, fixed_abs, tag = 'smem constant byte address 0x4 - core index']
  #allocation1 [shape = 'u32[72,128]{1,0:T(1,128)}', space=vmem, size = 0x9000, scoped, tag = 'internal scratch']
  #allocation2 [shape = 'f32[1,1]{1,0:T(1,128)S(6)}', space=smem, size = 0x200, scoped, tag = 'scoped memory for tpu_custom_call.1']
  %s0 = inlined_call_operand.vmem [shape: f32[16,32], index: 0, kind: input, shape index: {}]
  %s1 = inlined_call_operand.vmem [shape: bf16[32,8], index: 1, kind: input, shape index: {}]
  %s2 = inlined_call_operand.vmem [shape: f32[1,8], index: 2, kind: input, shape index: {}]
  %s3 = inlined_call_operand.vmem [shape: f32[1,8], index: 3, kind: input, shape index: {}]
  %s4 = inlined_call_operand.<no memory space> [shape: f32[1,1], index: 4, kind: input, shape index: {}]
  %s5 = inlined_call_operand.vmem [shape: f32[1,32], index: 5, kind: input, shape index: {}]
  %s6 = inlined_call_operand.vmem [shape: f32[1,32], index: 6, kind: input, shape index: {}]
  %s7 = inlined_call_operand.vmem [shape: f32[16,1], index: 7, kind: input, shape index: {}]
  %s8 = inlined_call_operand.hbm [shape: f32[16,32], index: 8, kind: output, shape index: {}]
  %s9 = sld [smem:[#allocation0]]
  $region42: #{tpu_custom_call.1} parent=0
    _
  %s11 = ssub.s32 1, %s9
  %s12 = scalar_select 0, %s11, %s9
  %13 = sst [smem:[#allocation2]] %s4
  $region1: #{tpu_custom_call.1} parent=0
    #allocation3 [shape = 'u8[8192]{0}', space=vmem, size = 0x2000, scoped, tag = 'output window, operand 0, single buffered']
    #allocation4 [shape = 's32[1]{0}', space=sflag, size = 0x4, scoped, tag = 'scoped memory for tpu_custom_call.1']
    %14 = vsyncpa [#allocation4], 0
    // Predicated region
    $region2: #{tpu_custom_call.1} parent=1 // pred_check
      _
    $region3: #{tpu_custom_call.1} parent=1 // pred_check_branch
      %16 = sbr.rel (0) target = $region5
    $region4: #{tpu_custom_call.1} parent=1 // pred_region
      _
    $region5: #{tpu_custom_call.1} parent=1 // pred_fallthru
      _
    // Predicated region
    $region6: #{tpu_custom_call.1} parent=1 // pred_check
      _
    $region7: #{tpu_custom_call.1} parent=1 // pred_check_branch
      %18 = sbr.rel (0) target = $region9
    $region8: #{tpu_custom_call.1} parent=1 // pred_region
      _
    $region9: #{tpu_custom_call.1} parent=1 // pred_fallthru
      _
    // Predicated region
    $region10: #{tpu_custom_call.1} parent=1 // pred_check
      _
    $region11: #{tpu_custom_call.1} parent=1 // pred_check_branch
      %20 = sbr.rel (0) target = $region13
    $region12: #{tpu_custom_call.1} parent=1 // pred_region
      _
    $region13: #{tpu_custom_call.1} parent=1 // pred_fallthru
      _
    // Predicated region
    $region14: #{tpu_custom_call.1} parent=1 // pred_check
      _
    $region15: #{tpu_custom_call.1} parent=1 // pred_check_branch
      %22 = sbr.rel (0) target = $region17
    $region16: #{tpu_custom_call.1} parent=1 // pred_region
      _
    $region17: #{tpu_custom_call.1} parent=1 // pred_fallthru
      _
    // Predicated region
    $region18: #{tpu_custom_call.1} parent=1 // pred_check
      _
    $region19: #{tpu_custom_call.1} parent=1 // pred_check_branch
      %24 = sbr.rel (0) target = $region21
    $region20: #{tpu_custom_call.1} parent=1 // pred_region
      _
    $region21: #{tpu_custom_call.1} parent=1 // pred_fallthru
      _
    // Predicated region
    $region22: #{tpu_custom_call.1} parent=1 // pred_check
      _
    $region23: #{tpu_custom_call.1} parent=1 // pred_check_branch
      %26 = sbr.rel (0) target = $region25
    $region24: #{tpu_custom_call.1} parent=1 // pred_region
      _
    $region25: #{tpu_custom_call.1} parent=1 // pred_fallthru
      _
    // Predicated region
    $region26: #{tpu_custom_call.1} parent=1 // pred_check
      _
    $region27: #{tpu_custom_call.1} parent=1 // pred_check_branch
      %28 = sbr.rel (0) target = $region29
    $region28: #{tpu_custom_call.1} parent=1 // pred_region
      _
    $region29: #{tpu_custom_call.1} parent=1 // pred_fallthru
      _
    // Predicated region
    $region30: #{tpu_custom_call.1} parent=1 // pred_check
      _
    $region31: #{tpu_custom_call.1} parent=1 // pred_check_branch
      %30 = sbr.rel (0) target = $region33
    $region32: #{tpu_custom_call.1} parent=1 // pred_region
      _
    $region33: #{tpu_custom_call.1} parent=1 // pred_fallthru
      _
    %v32 = vld [vmem:[%s0] sm:$0xff]
    %v33 = vld [vmem:[%s0 + $0x8] sm:$0xff]
    %v34 = vpack.c.bf16 %v33, %v32
    %v35 = vld [vmem:[%s1] sm:$0xf]
    %v36 = vld [vmem:[%s1 + $0x4] sm:$0xf]
    %v37 = vld [vmem:[%s1 + $0x8] sm:$0xf]
    %v38 = vld [vmem:[%s1 + $0xc] sm:$0xf]
    %v39 = vld [vmem:[%s2] sm:$0x1]
    %v41 = vperm.slane %v39, 0
    %v47 = vunpack.c.l.b16 %v35
    %v48 = vunpack.c.l.b16 %v36
    %v49 = vunpack.c.l.b16 %v37
    %v50 = vunpack.c.l.b16 %v38
    %v51 = vpack.c.b16 %v48, %v47
    %v52 = vpack.c.b16 %v50, %v49
    %vm55 = vcmask 261120
    %v57 = vsel %vm55, %v34, 0
    %59 = vmatpush.bf16.msra.mxu0 0
    %60 = vmatpush.bf16.msra.mxu0 0
    %61 = vmatpush.bf16.msra.mxu0 0
    %62 = vmatpush.bf16.msra.mxu0 0
    %63 = vmatpush.bf16.msra.mxu0 0
    %64 = vmatpush.bf16.msra.mxu0 0
    %65 = vmatpush.bf16.msra.mxu0 %v52
    %66 = vmatpush.bf16.msra.mxu0 %v51
    %67 = vmatmul.bf16.gmra.mxu0 %v57
    %v68 = vpop.f32.mrf.mxu0
    %v69 = vadd.f32 %v41, %v68
    %v70 = vpop.f32.mrf.mxu0
    %v71 = vadd.f32 %v41, %v70
    %72 = vdwg.mxu0
    %v73 = vmul.f32 %v69, %v69
    %v74 = vmul.f32 %v71, %v71
    %v75 = vmul.f32 %v69, %v73
    %v76 = vmul.f32 %v71, %v74
    %v77 = vmul.f32 %v75, 0.044715
    %v78 = vmul.f32 %v76, 0.044715
    %v79 = vadd.f32 %v69, %v77
    %v80 = vadd.f32 %v71, %v78
    %v81 = vmul.f32 %v79, 0.7978846
    %v82 = vmul.f32 %v80, 0.7978846
    %v83 = vtanh.pop %v81
    %v84 = vtanh.pop %v82
    %v85 = vadd.f32 %v83, 1.0
    %v86 = vadd.f32 %v84, 1.0
    %v87 = vmul.f32 %v85, 0.5
    %v88 = vmul.f32 %v86, 0.5
    %v89 = vmul.f32 %v69, %v87
    %v90 = vmul.f32 %v71, %v88
    %v91 = vld [vmem:[%s3] sm:$0x1]
    %v93 = vperm.slane %v91, 0
    %v95 = vmul.f32 %v89, %v93
    %v96 = vmul.f32 %v90, %v93
    %vm97 = vcmask 64512
    %v98 = vsel %vm97, %v95, 0.0
    %99 = vadd.xlane.f32.xlu0 %v98
    %v100 = vpop.xlane.xlu0 %99
    %v101 = vsel %vm97, %v96, 0.0
    %102 = vadd.xlane.f32.xlu0 %v101
    %v103 = vpop.xlane.xlu0 %102
    %s104 = sld [smem:[#allocation2]]
    %v105 = vstv %s104
    %v106 = vadd.f32 %v100, %v105
    %v107 = vadd.f32 %v103, %v105
    %v108 = vxor.u32 %v106, 2147483648
    %v109 = vxor.u32 %v107, 2147483648
    %v110 = vmul.f32 %v108, 1.442695
    %v111 = vpow.pop %v110
    %v112 = vmul.f32 %v109, 1.442695
    %v113 = vpow.pop %v112
    %v114 = vadd.f32 %v111, 1.0
    %v115 = vadd.f32 %v113, 1.0
    %v116 = vrcp.pop %v114
    %v117 = vmul.f32 %v114, %v116
    %v118 = vsub.f32 1.0, %v117
    %v119 = vmul.f32 %v116, %v118
    %v120 = vadd.f32 %v116, %v119
    %vm121 = vweird.f32 %v114
    %vm122 = vweird.f32 %v116
    %vm123 = vmor %vm121, %vm122
    %v124 = vsel %vm123, %v116, %v120
    %v125 = vand.u32 2147483647, %v114
    %vm126 = vcmp.eq.f32.partialorder %v125, 8.507059e+37
    %v127 = vand.u32 %v114, 2147483648
    %v128 = vor.u32 1.1754944e-38, %v127
    %v129 = vsel %vm126, %v128, %v124
    %v130 = vmul.f32 1.0, %v129
    %v131 = vrcp.pop %v115
    %v132 = vmul.f32 %v115, %v131
    %v133 = vsub.f32 1.0, %v132
    %v134 = vmul.f32 %v131, %v133
    %v135 = vadd.f32 %v131, %v134
    %vm136 = vweird.f32 %v115
    %vm137 = vweird.f32 %v131
    %vm138 = vmor %vm136, %vm137
    %v139 = vsel %vm138, %v131, %v135
    %v140 = vand.u32 2147483647, %v115
    %vm141 = vcmp.eq.f32.partialorder %v140, 8.507059e+37
    %v142 = vand.u32 %v115, 2147483648
    %v143 = vor.u32 1.1754944e-38, %v142
    %v144 = vsel %vm141, %v143, %v139
    %v145 = vmul.f32 1.0, %v144
    %v146 = vld [vmem:[%s7] sm:$0xff]
    %v147 = vld [vmem:[%s7 + $0x8] sm:$0xff]
    %v148 = vadd.f32 %v146, 1.0
    %v149 = vadd.f32 %v147, 1.0
    %v150 = vmul.f32 %v130, %v148
    %v151 = vmul.f32 %v145, %v149
    %v152 = vsel %vm55, %v32, 0.0
    %153 = vadd.xlane.f32.xlu0 %v152
    %v154 = vpop.xlane.xlu0 %153
    %v155 = vsel %vm55, %v33, 0.0
    %156 = vadd.xlane.f32.xlu0 %v155
    %v157 = vpop.xlane.xlu0 %156
    %v158 = vmul.f32 %v32, %v32
    %v159 = vmul.f32 %v33, %v33
    %v160 = vsel %vm55, %v158, 0.0
    %161 = vadd.xlane.f32.xlu0 %v160
    %v162 = vpop.xlane.xlu0 %161
    %v163 = vsel %vm55, %v159, 0.0
    %164 = vadd.xlane.f32.xlu0 %v163
    %v165 = vpop.xlane.xlu0 %164
    %v166 = vmul.f32 %v154, 0.03125
    %v167 = vmul.f32 %v157, 0.03125
    %v168 = vmul.f32 %v162, 0.03125
    %v169 = vmul.f32 %v165, 0.03125
    %v170 = vmul.f32 %v166, %v166
    %v171 = vmul.f32 %v167, %v167
    %v172 = vsub.f32 %v168, %v170
    %v173 = vsub.f32 %v169, %v171
    %v174 = vmax.f32 %v172, 0.0
    %v175 = vmax.f32 %v173, 0.0
    %v176 = vadd.f32 %v150, 1.0
    %v177 = vadd.f32 %v151, 1.0
    %v178 = vmul.f32 %v176, 1e-06
    %v179 = vmul.f32 %v177, 1e-06
    %v180 = vadd.f32 %v174, %v178
    %v181 = vadd.f32 %v175, %v179
    %v182 = vrsqrt.pop %v180
    %v183 = vmul.f32 %v182, %v180
    %v184 = vmul.f32 %v183, %v182
    %v185 = vmul.f32 0.5, %v184
    %v186 = vsub.f32 1.5, %v185
    %v187 = vmul.f32 %v182, %v186
    %vm188 = vweird.f32 %v180
    %vm189 = vweird.f32 %v182
    %vm190 = vmor %vm188, %vm189
    %v191 = vsel %vm190, %v182, %v187
    %v192 = vrsqrt.pop %v181
    %v193 = vmul.f32 %v192, %v181
    %v194 = vmul.f32 %v193, %v192
    %v195 = vmul.f32 0.5, %v194
    %v196 = vsub.f32 1.5, %v195
    %v197 = vmul.f32 %v192, %v196
    %vm198 = vweird.f32 %v181
    %vm199 = vweird.f32 %v192
    %vm200 = vmor %vm198, %vm199
    %v201 = vsel %vm200, %v192, %v197
    %v202 = vsub.f32 %v32, %v166
    %v203 = vsub.f32 %v33, %v167
    %205 = vset.pattern.permute.xlu0 0
    %206 = vperm.xlu0 %205, %v191
    %v207 = vpop.permute.xlu0 %206
    %210 = vset.pattern.permute.xlu0 0
    %211 = vperm.xlu0 %210, %v201
    %v212 = vpop.permute.xlu0 %211
    %v214 = vmul.f32 %v202, %v207
    %v215 = vmul.f32 %v203, %v212
    %v216 = vld [vmem:[%s5] sm:$0x1]
    %v218 = vperm.slane %v216, 0
    %v220 = vmul.f32 %v214, %v218
    %v221 = vmul.f32 %v215, %v218
    %v222 = vld [vmem:[%s6] sm:$0x1]
    %v224 = vperm.slane %v222, 0
    %v226 = vadd.f32 %v220, %v224
    %v227 = vadd.f32 %v221, %v224
    %228 = vst.msk [vmem:[#allocation3] sm:$0xff] %vm55, %v226
    %229 = vst.msk [vmem:[#allocation3 + $0x8] sm:$0xff] %vm55, %v227
    // Predicated region
    $region34: #{tpu_custom_call.1} parent=1 // pred_check
      _
    $region35: #{tpu_custom_call.1} parent=1 // pred_check_branch
      %231 = sbr.rel (0) target = $region37
    $region36: #{tpu_custom_call.1} parent=1 // pred_region
      %233 = vsyncadd [#allocation4], 0
      %s234 = sshll.u32 [#allocation3], 4
      %s235 = int_to_ptr.vmem [resolvable:$true] %s234
      %s236 = sshll.u32 %s8, 4
      %s237 = int_to_ptr.hbm [resolvable:$true] %s236
      %242 = dma.vmem_to_hbm [thread:$0]  %s235, 256, %s237, [#allocation4], 128, 128, 8
    $region37: #{tpu_custom_call.1} parent=1 // pred_fallthru
      _
    // Predicated region
    $region38: #{tpu_custom_call.1} parent=1 // pred_check
      _
    $region39: #{tpu_custom_call.1} parent=1 // pred_check_branch
      %244 = sbr.rel (0) target = $region41
    $region40: #{tpu_custom_call.1} parent=1 // pred_region
      %246 = dma.done [#allocation4], 256
    $region41: #{tpu_custom_call.1} parent=1 // pred_fallthru
      _
    %247 = vsyncpa [#allocation4], 1

</llo_original>
